<compile_context>
chip_gen: v7x
topology: tpu7x:2x2x1
jax: 0.10.0
libtpu: 0.0.40
codegen_flags: <defaults>
</compile_context>

<pallas_src>
import functools
import math

import numpy as np
import jax
import jax.numpy as jnp
from jax.experimental import pallas as pl
from jax.experimental.pallas import tpu as pltpu

C2 = [2, 7, 2, 2, 3]        # cardinalities of x[:, 10:15] -> 16 one-hot cols
C3 = [11, 3, 2, 10, 5]      # cardinalities of x[:, 15:20] -> 31 one-hot cols
RAW_DIM = 20                # raw input columns fed to the kernel
N_HIDDEN_2 = 200
OUT_DIM = 2
N_CAT = sum(C2) + sum(C3)   # 47 one-hot columns
CAT_PAD = 48                # padded to a multiple of 8 sublanes
H_FUSED = 3 * N_HIDDEN_2    # 600
H_PAD = 640                 # 600 padded up to a multiple of 128 lanes
DEFAULT_BATCH_TILE = 2048


def _round_up(n, m):
    return ((n + m - 1) // m) * m


# -----------------------------------------------------------------------------
# Kernel: one batch tile.
#   out = ((x @ W1c + onehot(x_cat) @ W1cat + b1) @ W2) + b2 + noise2
# -----------------------------------------------------------------------------
def _mlp_kernel(x_ref, g_ref, codes_ref, w1c_ref, w1cat_ref, b1_ref,
                w2_ref, b2_ref, nz_ref, out_ref):
    x = x_ref[...]                                                   # [tb, 20]

    # Route each raw categorical column to its one-hot slots; values are small exact integers,
    # so the 0/1 routing matmul is exact and floor() reproduces torch's (X-1).long() truncation.
    proj = jnp.dot(x, g_ref[...], preferred_element_type=jnp.float32)      # [tb, 48]
    onehot = (jnp.floor(proj) == codes_ref[...]).astype(jnp.float32)       # [tb, 48]

    # Fused first layer: continuous branch (categorical raw rows of W1c are zero) + one-hot branch.
    h = (jnp.dot(x, w1c_ref[...], preferred_element_type=jnp.float32)
         + jnp.dot(onehot, w1cat_ref[...], preferred_element_type=jnp.float32)
         + b1_ref[...])                                              # [tb, 640]
    # TODO(synk): torch raises ValueError on NaN in the hidden concat; no in-kernel raise on TPU.

    # Second layer + rank-2 output noise (distributionally equal to per-hidden-unit noise @ W2).
    out_ref[...] = (jnp.dot(h, w2_ref[...], preferred_element_type=jnp.float32)
                    + b2_ref[...] + nz_ref[...])


def run_mlp(x, g_cat, codes, w1c, w1cat, b1, w2, b2, nz, *, batch_tile=DEFAULT_BATCH_TILE):
    """x: [B, 20] f32 raw input; nz: [B, 2] precomputed output-space noise."""
    B = x.shape[0]
    tb = min(batch_tile, _round_up(max(B, 8), 8))          # tile >= 8 sublanes
    # Prefer >= 2 grid steps so the "parallel" batch axis can shard across v7x's 2 TensorCores.
    if _round_up(B, tb) // tb < 2 and tb >= 512:
        tb = max(256, _round_up(tb // 2, 8))
    Bp = _round_up(B, tb)
    if Bp != B:
        pad = Bp - B
        x = jnp.pad(x, ((0, pad), (0, 0)))                 # padded rows sliced off below
        nz = jnp.pad(nz, ((0, pad), (0, 0)))
    grid = (Bp // tb,)

    flops = 2 * Bp * (RAW_DIM * CAT_PAD + RAW_DIM * H_PAD + CAT_PAD * H_PAD + H_PAD * OUT_DIM)
    bytes_accessed = 4 * (Bp * RAW_DIM + Bp * OUT_DIM * 2
                          + g_cat.size + codes.size + w1c.size + w1cat.size
                          + b1.size + w2.size + b2.size)

    out = pl.pallas_call(
        _mlp_kernel,
        out_shape=jax.ShapeDtypeStruct((Bp, OUT_DIM), jnp.float32),
        grid_spec=pltpu.PrefetchScalarGridSpec(
            num_scalar_prefetch=0,
            grid=grid,
            in_specs=[
                pl.BlockSpec((tb, RAW_DIM), lambda i: (i, 0)),        # x tile (pipelined)
                pl.BlockSpec((RAW_DIM, CAT_PAD), lambda i: (0, 0)),   # one-hot routing (resident)
                pl.BlockSpec((1, CAT_PAD), lambda i: (0, 0)),         # one-hot codes (resident)
                pl.BlockSpec((RAW_DIM, H_PAD), lambda i: (0, 0)),     # W1 continuous (resident)
                pl.BlockSpec((CAT_PAD, H_PAD), lambda i: (0, 0)),     # W1 categorical (resident)
                pl.BlockSpec((1, H_PAD), lambda i: (0, 0)),           # b1 (resident)
                pl.BlockSpec((H_PAD, OUT_DIM), lambda i: (0, 0)),     # W2 (resident)
                pl.BlockSpec((1, OUT_DIM), lambda i: (0, 0)),         # b2 (resident)
                pl.BlockSpec((tb, OUT_DIM), lambda i: (i, 0)),        # rank-2 noise tile (pipelined)
            ],
            out_specs=pl.BlockSpec((tb, OUT_DIM), lambda i: (i, 0)),
        ),
        compiler_params=pltpu.CompilerParams(
            dimension_semantics=("parallel",),
            vmem_limit_bytes=32 * 1024 * 1024,
        ),
        cost_estimate=pl.CostEstimate(
            flops=flops, transcendentals=0, bytes_accessed=bytes_accessed
        ),
    )(x, g_cat, codes, w1c, w1cat, b1, w2, b2, nz)
    return out[:B]


# -----------------------------------------------------------------------------
# Glue: one-hot routing tables, parameter init (nn.Linear-style), fusion, forward
# -----------------------------------------------------------------------------
def make_onehot_tables():
    """G_cat [20,48] routes raw categorical col -> one-hot slot; codes [1,48] = target category value."""
    g = np.zeros((RAW_DIM, CAT_PAD), np.float32)
    codes = np.full((1, CAT_PAD), -1.0, np.float32)       # pad column never matches
    off = 0
    for j, card in enumerate(C2 + C3):
        for k in range(card):
            g[10 + j, off + k] = 1.0
            codes[0, off + k] = float(k + 1)
        off += card
    return jnp.asarray(g), jnp.asarray(codes)


def _linear_params(key, fan_in, fan_out):
    kw, kb = jax.random.split(key)
    bound = 1.0 / math.sqrt(fan_in)
    w = jax.random.uniform(kw, (fan_in, fan_out), jnp.float32, -bound, bound)
    b = jax.random.uniform(kb, (fan_out,), jnp.float32, -bound, bound)
    return w, b


def make_params(key):
    k1, k2, k3, k4 = jax.random.split(key, 4)
    w11, b11 = _linear_params(k1, 10, N_HIDDEN_2)          # layer1_1
    w12, b12 = _linear_params(k2, sum(C2), N_HIDDEN_2)     # layer1_2
    w13, b13 = _linear_params(k3, sum(C3), N_HIDDEN_2)     # layer1_3
    w2, b2 = _linear_params(k4, H_FUSED, OUT_DIM)          # layer2

    # Continuous branch of the fused first layer: raw categorical rows are zero.
    w1c = jnp.zeros((RAW_DIM, H_PAD), jnp.float32).at[0:10, 0:N_HIDDEN_2].set(w11)
    # One-hot branch, block-diagonal over the 47 one-hot columns (col 47 / hidden 600:640 are zero pad).
    w1cat = jnp.zeros((CAT_PAD, H_PAD), jnp.float32)
    w1cat = w1cat.at[0:sum(C2), N_HIDDEN_2:2 * N_HIDDEN_2].set(w12)
    w1cat = w1cat.at[sum(C2):N_CAT, 2 * N_HIDDEN_2:H_FUSED].set(w13)
    b1 = jnp.zeros((1, H_PAD), jnp.float32).at[0, :H_FUSED].set(
        jnp.concatenate([b11, b12, b13]))
    w2p = jnp.zeros((H_PAD, OUT_DIM), jnp.float32).at[:H_FUSED, :].set(w2)

    # Unit-variance Cholesky factor of W2^T W2: hidden-layer noise N(0, std^2 I_600) pushed through
    # W2 is N(0, std^2 W2^T W2), so std * eps @ chol^T with eps~N(0,I_2) is distributionally identical.
    chol = jnp.linalg.cholesky(w2.T @ w2 + 1e-12 * jnp.eye(OUT_DIM, dtype=jnp.float32))

    g_cat, codes = make_onehot_tables()
    return dict(g_cat=g_cat, codes=codes, w1c=w1c, w1cat=w1cat, b1=b1,
                w2=w2p, b2=b2.reshape(1, OUT_DIM), chol=chol)


def forward(x, noise_scale, params, noise_key):
    """x: [B, 20] f32 (10 continuous + 10 categorical codes as floats)."""
    std = math.sqrt(float(noise_scale))                    # torch uses noise_scale as a variance
    eps = jax.random.normal(noise_key, (x.shape[0], OUT_DIM), jnp.float32)
    # TODO(synk): rank-2 noise is distributionally equivalent to per-hidden-unit noise, not bit-identical.
    nz = (std * eps) @ params["chol"].T                    # [B, 2]
    return run_mlp(x, params["g_cat"], params["codes"], params["w1c"], params["w1cat"],
                   params["b1"], params["w2"], params["b2"], nz)


if __name__ == "__main__":
    key = jax.random.PRNGKey(0)
    kx1, kx2, kx3, kp, kn = jax.random.split(key, 5)

    B = 8
    # Continuous part.
    X1 = jax.random.normal(kx1, (B, 10), jnp.float32)
    # Categorical parts, values in 1..cardinality (as floats, like the torch module expects).
    X2 = jnp.stack(
        [jax.random.randint(jax.random.fold_in(kx2, i), (B,), 1, C2[i] + 1) for i in range(5)],
        axis=1,
    ).astype(jnp.float32)
    X3 = jnp.stack(
        [jax.random.randint(jax.random.fold_in(kx3, i), (B,), 1, C3[i] + 1) for i in range(5)],
        axis=1,
    ).astype(jnp.float32)
    x = jnp.concatenate([X1, X2, X3], axis=1)              # [B, 20]

    params = make_params(kp)
    noise_scale = 0.01

    out = forward(x, noise_scale, params, kn)
    out = jax.block_until_ready(out)
    assert out.shape == (B, OUT_DIM) and out.dtype == jnp.float32
    assert bool(jnp.all(jnp.isfinite(out)))
    print("KERNEL_OK")
</pallas_src>

<mosaic_0001>
module attributes {stable_mosaic.version = 11 : i64} {
  func.func @_mlp_kernel(%arg0: i32, %arg1: memref<8x20xf32, #tpu.memory_space<vmem>>, %arg2: memref<20x48xf32, #tpu.memory_space<vmem>>, %arg3: memref<1x48xf32, #tpu.memory_space<vmem>>, %arg4: memref<20x640xf32, #tpu.memory_space<vmem>>, %arg5: memref<48x640xf32, #tpu.memory_space<vmem>>, %arg6: memref<1x640xf32, #tpu.memory_space<vmem>>, %arg7: memref<640x2xf32, #tpu.memory_space<vmem>>, %arg8: memref<1x2xf32, #tpu.memory_space<vmem>>, %arg9: memref<8x2xf32, #tpu.memory_space<vmem>>, %arg10: memref<8x2xf32, #tpu.memory_space<vmem>>) attributes {dimension_semantics = [#tpu.dimension_semantics<parallel>], iteration_bounds = array<i64: 1>, scalar_prefetch = 0 : i64, scratch_operands = 0 : i64, tpu.core_type = #tpu.core_type<tc>, window_params = [{transform_indices = @transform_0, window_bounds = array<i64: 8, 20>}, {pipeline_mode = #tpu.pipeline_mode<synchronous>, transform_indices = @transform_1, window_bounds = array<i64: 20, 48>}, {pipeline_mode = #tpu.pipeline_mode<synchronous>, transform_indices = @transform_2, window_bounds = array<i64: 1, 48>}, {pipeline_mode = #tpu.pipeline_mode<synchronous>, transform_indices = @transform_3, window_bounds = array<i64: 20, 640>}, {pipeline_mode = #tpu.pipeline_mode<synchronous>, transform_indices = @transform_4, window_bounds = array<i64: 48, 640>}, {pipeline_mode = #tpu.pipeline_mode<synchronous>, transform_indices = @transform_5, window_bounds = array<i64: 1, 640>}, {pipeline_mode = #tpu.pipeline_mode<synchronous>, transform_indices = @transform_6, window_bounds = array<i64: 640, 2>}, {pipeline_mode = #tpu.pipeline_mode<synchronous>, transform_indices = @transform_7, window_bounds = array<i64: 1, 2>}, {transform_indices = @transform_8, window_bounds = array<i64: 8, 2>}, {transform_indices = @transform_9, window_bounds = array<i64: 8, 2>}]} {
    %c0 = arith.constant 0 : index
    %c0_0 = arith.constant 0 : index
    %0 = vector.load %arg1[%c0, %c0_0] : memref<8x20xf32, #tpu.memory_space<vmem>>, vector<8x20xf32>
    %c0_1 = arith.constant 0 : index
    %c0_2 = arith.constant 0 : index
    %1 = vector.load %arg2[%c0_1, %c0_2] : memref<20x48xf32, #tpu.memory_space<vmem>>, vector<20x48xf32>
    %cst = arith.constant dense<0.000000e+00> : vector<8x48xf32>
    %2 = tpu.matmul %0, %1, %cst {dimension_numbers = #tpu.dot_dimension_numbers<[1], [0], [0], [1], [0, 0, 1, 1], [], []>} : vector<8x20xf32>, vector<20x48xf32>, vector<8x48xf32> -> vector<8x48xf32>
    %3 = math.floor %2 : vector<8x48xf32>
    %c0_3 = arith.constant 0 : index
    %c0_4 = arith.constant 0 : index
    %4 = vector.load %arg3[%c0_3, %c0_4] : memref<1x48xf32, #tpu.memory_space<vmem>>, vector<1x48xf32>
    %5 = vector.broadcast %4 : vector<1x48xf32> to vector<8x48xf32>
    %6 = arith.cmpf oeq, %3, %5 : vector<8x48xf32>
    %7 = arith.extui %6 : vector<8x48xi1> to vector<8x48xi32>
    %8 = arith.sitofp %7 : vector<8x48xi32> to vector<8x48xf32>
    %c0_5 = arith.constant 0 : index
    %c0_6 = arith.constant 0 : index
    %9 = vector.load %arg4[%c0_5, %c0_6] : memref<20x640xf32, #tpu.memory_space<vmem>>, vector<20x640xf32>
    %cst_7 = arith.constant dense<0.000000e+00> : vector<8x640xf32>
    %10 = tpu.matmul %0, %9, %cst_7 {dimension_numbers = #tpu.dot_dimension_numbers<[1], [0], [0], [1], [0, 0, 1, 1], [], []>} : vector<8x20xf32>, vector<20x640xf32>, vector<8x640xf32> -> vector<8x640xf32>
    %c0_8 = arith.constant 0 : index
    %c0_9 = arith.constant 0 : index
    %11 = vector.load %arg5[%c0_8, %c0_9] : memref<48x640xf32, #tpu.memory_space<vmem>>, vector<48x640xf32>
    %cst_10 = arith.constant dense<0.000000e+00> : vector<8x640xf32>
    %12 = tpu.matmul %8, %11, %cst_10 {dimension_numbers = #tpu.dot_dimension_numbers<[1], [0], [0], [1], [0, 0, 1, 1], [], []>} : vector<8x48xf32>, vector<48x640xf32>, vector<8x640xf32> -> vector<8x640xf32>
    %13 = arith.addf %10, %12 : vector<8x640xf32>
    %c0_11 = arith.constant 0 : index
    %c0_12 = arith.constant 0 : index
    %14 = vector.load %arg6[%c0_11, %c0_12] : memref<1x640xf32, #tpu.memory_space<vmem>>, vector<1x640xf32>
    %15 = vector.broadcast %14 : vector<1x640xf32> to vector<8x640xf32>
    %16 = arith.addf %13, %15 : vector<8x640xf32>
    %c0_13 = arith.constant 0 : index
    %c0_14 = arith.constant 0 : index
    %17 = vector.load %arg7[%c0_13, %c0_14] : memref<640x2xf32, #tpu.memory_space<vmem>>, vector<640x2xf32>
    %cst_15 = arith.constant dense<0.000000e+00> : vector<8x2xf32>
    %18 = tpu.matmul %16, %17, %cst_15 {dimension_numbers = #tpu.dot_dimension_numbers<[1], [0], [0], [1], [0, 0, 1, 1], [], []>} : vector<8x640xf32>, vector<640x2xf32>, vector<8x2xf32> -> vector<8x2xf32>
    %c0_16 = arith.constant 0 : index
    %c0_17 = arith.constant 0 : index
    %19 = vector.load %arg8[%c0_16, %c0_17] : memref<1x2xf32, #tpu.memory_space<vmem>>, vector<1x2xf32>
    %20 = vector.broadcast %19 : vector<1x2xf32> to vector<8x2xf32>
    %21 = arith.addf %18, %20 : vector<8x2xf32>
    %c0_18 = arith.constant 0 : index
    %c0_19 = arith.constant 0 : index
    %22 = vector.load %arg9[%c0_18, %c0_19] : memref<8x2xf32, #tpu.memory_space<vmem>>, vector<8x2xf32>
    %23 = arith.addf %21, %22 : vector<8x2xf32>
    %c0_20 = arith.constant 0 : index
    %c0_21 = arith.constant 0 : index
    %24 = vector.load %arg10[%c0_20, %c0_21] : memref<8x2xf32, #tpu.memory_space<vmem>>, vector<8x2xf32>
    tpu.vector_store %arg10[%c0_20, %c0_21], %23 {strides = array<i32>} : memref<8x2xf32, #tpu.memory_space<vmem>>, vector<8x2xf32>,
    return
  }
  func.func @transform_0(%arg0: i32) -> (i32, i32) {
    %c0_i32 = arith.constant 0 : i32
    %c0_i32_0 = arith.constant 0 : i32
    return %arg0, %c0_i32 : i32, i32
  }
  func.func @transform_1(%arg0: i32) -> (i32, i32) {
    %c0_i32 = arith.constant 0 : i32
    %c0_i32_0 = arith.constant 0 : i32
    %c0_i32_1 = arith.constant 0 : i32
    return %c0_i32, %c0_i32_0 : i32, i32
  }
  func.func @transform_2(%arg0: i32) -> (i32, i32) {
    %c0_i32 = arith.constant 0 : i32
    %c0_i32_0 = arith.constant 0 : i32
    %c0_i32_1 = arith.constant 0 : i32
    return %c0_i32, %c0_i32_0 : i32, i32
  }
  func.func @transform_3(%arg0: i32) -> (i32, i32) {
    %c0_i32 = arith.constant 0 : i32
    %c0_i32_0 = arith.constant 0 : i32
    %c0_i32_1 = arith.constant 0 : i32
    return %c0_i32, %c0_i32_0 : i32, i32
  }
  func.func @transform_4(%arg0: i32) -> (i32, i32) {
    %c0_i32 = arith.constant 0 : i32
    %c0_i32_0 = arith.constant 0 : i32
    %c0_i32_1 = arith.constant 0 : i32
    return %c0_i32, %c0_i32_0 : i32, i32
  }
  func.func @transform_5(%arg0: i32) -> (i32, i32) {
    %c0_i32 = arith.constant 0 : i32
    %c0_i32_0 = arith.constant 0 : i32
    %c0_i32_1 = arith.constant 0 : i32
    return %c0_i32, %c0_i32_0 : i32, i32
  }
  func.func @transform_6(%arg0: i32) -> (i32, i32) {
    %c0_i32 = arith.constant 0 : i32
    %c0_i32_0 = arith.constant 0 : i32
    %c0_i32_1 = arith.constant 0 : i32
    return %c0_i32, %c0_i32_0 : i32, i32
  }
  func.func @transform_7(%arg0: i32) -> (i32, i32) {
    %c0_i32 = arith.constant 0 : i32
    %c0_i32_0 = arith.constant 0 : i32
    %c0_i32_1 = arith.constant 0 : i32
    return %c0_i32, %c0_i32_0 : i32, i32
  }
  func.func @transform_8(%arg0: i32) -> (i32, i32) {
    %c0_i32 = arith.constant 0 : i32
    %c0_i32_0 = arith.constant 0 : i32
    return %arg0, %c0_i32 : i32, i32
  }
  func.func @transform_9(%arg0: i32) -> (i32, i32) {
    %c0_i32 = arith.constant 0 : i32
    %c0_i32_0 = arith.constant 0 : i32
    return %arg0, %c0_i32 : i32, i32
  }
}

</mosaic_0001>

<llo_original>
// kernel: tpu_custom_call.1
$region0: #{tpu_custom_call.1}
  #allocation0 [shape = 'u32[]', space=smem, size = 0x4, offset = 0x4, fixed_abs, tag = 'smem constant byte address 0x4 - core index']
  #allocation1 [shape = 'u32[144,128]{1,0:T(1,128)}', space=vmem, size = 0x12000, scoped, tag = 'internal scratch']
  %s0 = inlined_call_operand.vmem [shape: f32[8,20], index: 0, kind: input, shape index: {}]
  %s1 = inlined_call_operand.vmem [shape: f32[20,48], index: 1, kind: input, shape index: {}]
  %s2 = inlined_call_operand.vmem [shape: f32[1,48], index: 2, kind: input, shape index: {}]
  %s3 = inlined_call_operand.vmem [shape: f32[20,640], index: 3, kind: input, shape index: {}]
  %s4 = inlined_call_operand.vmem [shape: f32[48,640], index: 4, kind: input, shape index: {}]
  %s5 = inlined_call_operand.vmem [shape: f32[1,640], index: 5, kind: input, shape index: {}]
  %s6 = inlined_call_operand.vmem [shape: f32[640,2], index: 6, kind: input, shape index: {}]
  %s7 = inlined_call_operand.vmem [shape: f32[1,2], index: 7, kind: input, shape index: {}]
  %s8 = inlined_call_operand.vmem [shape: f32[8,2], index: 8, kind: input, shape index: {}]
  %s9 = inlined_call_operand.vmem [shape: f32[8,2], index: 9, kind: output, shape index: {}]
  %s10 = sld [smem:[#allocation0]]
  $region46: #{tpu_custom_call.1} parent=0
    _
  %s12 = ssub.s32 1, %s10
  %s13 = scalar_select 0, %s12, %s10
  // Predicated region
  $region2: #{tpu_custom_call.1} parent=0 // pred_check
    _
  $region3: #{tpu_custom_call.1} parent=0 // pred_check_branch
    %15 = sbr.rel (0) target = $region5
  $region4: #{tpu_custom_call.1} parent=0 // pred_region
    _
  $region5: #{tpu_custom_call.1} parent=0 // pred_fallthru
    _
  // Predicated region
  $region6: #{tpu_custom_call.1} parent=0 // pred_check
    _
  $region7: #{tpu_custom_call.1} parent=0 // pred_check_branch
    %17 = sbr.rel (0) target = $region9
  $region8: #{tpu_custom_call.1} parent=0 // pred_region
    _
  $region9: #{tpu_custom_call.1} parent=0 // pred_fallthru
    _
  // Predicated region
  $region10: #{tpu_custom_call.1} parent=0 // pred_check
    _
  $region11: #{tpu_custom_call.1} parent=0 // pred_check_branch
    %19 = sbr.rel (0) target = $region13
  $region12: #{tpu_custom_call.1} parent=0 // pred_region
    _
  $region13: #{tpu_custom_call.1} parent=0 // pred_fallthru
    _
  // Predicated region
  $region14: #{tpu_custom_call.1} parent=0 // pred_check
    _
  $region15: #{tpu_custom_call.1} parent=0 // pred_check_branch
    %21 = sbr.rel (0) target = $region17
  $region16: #{tpu_custom_call.1} parent=0 // pred_region
    _
  $region17: #{tpu_custom_call.1} parent=0 // pred_fallthru
    _
  // Predicated region
  $region18: #{tpu_custom_call.1} parent=0 // pred_check
    _
  $region19: #{tpu_custom_call.1} parent=0 // pred_check_branch
    %23 = sbr.rel (0) target = $region21
  $region20: #{tpu_custom_call.1} parent=0 // pred_region
    _
  $region21: #{tpu_custom_call.1} parent=0 // pred_fallthru
    _
  // Predicated region
  $region22: #{tpu_custom_call.1} parent=0 // pred_check
    _
  $region23: #{tpu_custom_call.1} parent=0 // pred_check_branch
    %25 = sbr.rel (0) target = $region25
  $region24: #{tpu_custom_call.1} parent=0 // pred_region
    _
  $region25: #{tpu_custom_call.1} parent=0 // pred_fallthru
    _
  // Predicated region
  $region26: #{tpu_custom_call.1} parent=0 // pred_check
    _
  $region27: #{tpu_custom_call.1} parent=0 // pred_check_branch
    %27 = sbr.rel (0) target = $region29
  $region28: #{tpu_custom_call.1} parent=0 // pred_region
    _
  $region29: #{tpu_custom_call.1} parent=0 // pred_fallthru
    _
  // Predicated region
  $region30: #{tpu_custom_call.1} parent=0 // pred_check
    _
  $region31: #{tpu_custom_call.1} parent=0 // pred_check_branch
    %29 = sbr.rel (0) target = $region33
  $region32: #{tpu_custom_call.1} parent=0 // pred_region
    _
  $region33: #{tpu_custom_call.1} parent=0 // pred_fallthru
    _
  // Predicated region
  $region34: #{tpu_custom_call.1} parent=0 // pred_check
    _
  $region35: #{tpu_custom_call.1} parent=0 // pred_check_branch
    %31 = sbr.rel (0) target = $region37
  $region36: #{tpu_custom_call.1} parent=0 // pred_region
    _
  $region37: #{tpu_custom_call.1} parent=0 // pred_fallthru
    _
  %v32 = vld [vmem:[%s0] sm:$0xff]
  %v33 = vld [vmem:[%s1] sm:$0xff]
  %v34 = vld [vmem:[%s1 + $0x8] sm:$0xff]
  %v35 = vld [vmem:[%s1 + $0x10] sm:$0xf]
  %vm36 = vcmask 162816
  %v38 = vsel %vm36, %v32, 0
  %vm40 = vcmask 1043456
  %v42 = vsel %vm40, %v35, 0
  %44 = vmatprep.subr.mxu0 0.0
  %45 = vmatpush1.msra.mxu0 %v33
  %46 = vmatprep.subr.mxu0 0.0
  %47 = vmatpush1.msra.mxu0 %v34
  %48 = vmatprep.subr.mxu0 0.0
  %49 = vmatpush1.msra.mxu0 %v42
  %50 = vmatprep.subr.mxu0 0.0
  %51 = vmatpush1.msra.mxu0 0.0
  %52 = vmatprep.subr.mxu0 0.0
  %53 = vmatpush1.msra.mxu0 0.0
  %54 = vmatprep.subr.mxu0 0.0
  %55 = vmatpush1.msra.mxu0 0.0
  %56 = vmatprep.subr.mxu0 0.0
  %57 = vmatpush1.msra.mxu0 0.0
  %58 = vmatprep.subr.mxu0 0.0
  %59 = vmatpush1.msra.mxu0 0.0
  %60 = vmatprep.subr.mxu0 0.0
  %61 = vmatpush1.msra.mxu0 0.0
  %62 = vmatprep.subr.mxu0 0.0
  %63 = vmatpush1.msra.mxu0 0.0
  %64 = vmatprep.subr.mxu0 0.0
  %65 = vmatpush1.msra.mxu0 0.0
  %66 = vmatprep.subr.mxu0 0.0
  %67 = vmatpush1.msra.mxu0 0.0
  %68 = vmatprep.subr.mxu0 0.0
  %69 = vmatpush1.msra.mxu0 0.0
  %70 = vmatprep.subr.mxu0 0.0
  %71 = vmatpush1.msra.mxu0 0.0
  %72 = vmatprep.subr.mxu0 0.0
  %73 = vmatpush1.msra.mxu0 0.0
  %74 = vmatprep.subr.mxu0 0.0
  %75 = vmatpush1.msra.mxu0 0.0
  %76 = vmatprep.subr.mxu0 0.0
  %77 = vmatpush1.msra.mxu0 0.0
  %78 = vmatprep.subr.mxu0 0.0
  %79 = vmatpush1.msra.mxu0 0.0
  %80 = vmatprep.subr.mxu0 0.0
  %81 = vmatpush1.msra.mxu0 0.0
  %82 = vmatprep.subr.mxu0 0.0
  %83 = vmatpush1.msra.mxu0 0.0
  %84 = vmatprep.subr.mxu0 0.0
  %85 = vmatpush1.msra.mxu0 0.0
  %86 = vmatprep.subr.mxu0 0.0
  %87 = vmatpush1.msra.mxu0 0.0
  %88 = vmatprep.subr.mxu0 0.0
  %89 = vmatpush1.msra.mxu0 0.0
  %90 = vmatprep.subr.mxu0 0.0
  %91 = vmatpush1.msra.mxu0 0.0
  %92 = vmatprep.subr.mxu0 0.0
  %93 = vmatpush1.msra.mxu0 0.0
  %94 = vmatprep.subr.mxu0 0.0
  %95 = vmatpush1.msra.mxu0 0.0
  %96 = vmatprep.subr.mxu0 0.0
  %97 = vmatpush1.msra.mxu0 0.0
  %98 = vmatprep.subr.mxu0 0.0
  %99 = vmatpush1.msra.mxu0 0.0
  %100 = vmatprep.subr.mxu0 0.0
  %101 = vmatpush1.msra.mxu0 0.0
  %102 = vmatprep.subr.mxu0 0.0
  %103 = vmatpush1.msra.mxu0 0.0
  %104 = vmatprep.subr.mxu0 0.0
  %105 = vmatpush1.msra.mxu0 0.0
  %106 = vmatprep.subr.mxu0 0.0
  %107 = vmatpush1.msra.mxu0 0.0
  %108 = vmatprep.mubr.f32.mxu0 0.0
  %109 = vmatmul.mubr.f32.gmra.mrb[0].mxu0 %v38
  %v110 = vpop.f32.mrb[0].mxu0
  %v111 = vadd.f32 0.0, %v110
  %v112 = vpop.f32.mrb[0].mxu0
  %113 = vdwg.mxu0
  %v114 = vfloor.f32 %v111
  %v115 = vld [vmem:[%s2] sm:$0x1]
  %v117 = vlaneseq
  %v118 = vshrl.u32 %v117, 7
  %v119 = vsub.s32 0, %v118
  %v120 = vrot.slane %v115, %v119
  %vm122 = vcmp.eq.f32.partialorder %v114, %v120
  %v123 = vsel %vm122, 1, 0
  %v124 = vcvt.s32.f32 %v123
  %v125 = vld [vmem:[%s3] sm:$0xff]
  %v126 = vld [vmem:[%s3 + $0x8] sm:$0xff]
  %v127 = vld [vmem:[%s3 + $0x10] sm:$0xff]
  %v128 = vld [vmem:[%s3 + $0x18] sm:$0xff]
  %v129 = vld [vmem:[%s3 + $0x20] sm:$0xff]
  %v130 = vld [vmem:[%s3 + $0x28] sm:$0xff]
  %v131 = vld [vmem:[%s3 + $0x30] sm:$0xff]
  %v132 = vld [vmem:[%s3 + $0x38] sm:$0xff]
  %v133 = vld [vmem:[%s3 + $0x40] sm:$0xff]
  %v134 = vld [vmem:[%s3 + $0x48] sm:$0xff]
  %v135 = vld [vmem:[%s3 + $0x50] sm:$0xf]
  %v136 = vld [vmem:[%s3 + $0x58] sm:$0xf]
  %v137 = vld [vmem:[%s3 + $0x60] sm:$0xf]
  %v138 = vld [vmem:[%s3 + $0x68] sm:$0xf]
  %v139 = vld [vmem:[%s3 + $0x70] sm:$0xf]
  %v140 = vld [vmem:[%s4] sm:$0xff]
  %v141 = vld [vmem:[%s4 + $0x8] sm:$0xff]
  %v142 = vld [vmem:[%s4 + $0x10] sm:$0xff]
  %v143 = vld [vmem:[%s4 + $0x18] sm:$0xff]
  %v144 = vld [vmem:[%s4 + $0x20] sm:$0xff]
  %v145 = vld [vmem:[%s4 + $0x28] sm:$0xff]
  %v146 = vld [vmem:[%s4 + $0x30] sm:$0xff]
  %v147 = vld [vmem:[%s4 + $0x38] sm:$0xff]
  %v148 = vld [vmem:[%s4 + $0x40] sm:$0xff]
  %v149 = vld [vmem:[%s4 + $0x48] sm:$0xff]
  %v150 = vld [vmem:[%s4 + $0x50] sm:$0xff]
  %v151 = vld [vmem:[%s4 + $0x58] sm:$0xff]
  %v152 = vld [vmem:[%s4 + $0x60] sm:$0xff]
  %v153 = vld [vmem:[%s4 + $0x68] sm:$0xff]
  %v154 = vld [vmem:[%s4 + $0x70] sm:$0xff]
  %v155 = vld [vmem:[%s4 + $0x78] sm:$0xff]
  %v156 = vld [vmem:[%s4 + $0x80] sm:$0xff]
  %v157 = vld [vmem:[%s4 + $0x88] sm:$0xff]
  %v158 = vld [vmem:[%s4 + $0x90] sm:$0xff]
  %v159 = vld [vmem:[%s4 + $0x98] sm:$0xff]
  %v160 = vld [vmem:[%s4 + $0xa0] sm:$0xff]
  %v161 = vld [vmem:[%s4 + $0xa8] sm:$0xff]
  %v162 = vld [vmem:[%s4 + $0xb0] sm:$0xff]
  %v163 = vld [vmem:[%s4 + $0xb8] sm:$0xff]
  %v164 = vld [vmem:[%s4 + $0xc0] sm:$0xff]
  %v165 = vld [vmem:[%s4 + $0xc8] sm:$0xff]
  %v166 = vld [vmem:[%s4 + $0xd0] sm:$0xff]
  %v167 = vld [vmem:[%s4 + $0xd8] sm:$0xff]
  %v168 = vld [vmem:[%s4 + $0xe0] sm:$0xff]
  %v169 = vld [vmem:[%s4 + $0xe8] sm:$0xff]
  %vm170 = vcmask 392192
  %v172 = vsel %vm170, %v124, 0
  %174 = vmatprep.subr.mxu0 %v141
  %175 = vmatpush1.msra.mxu0 %v140
  %176 = vmatprep.subr.mxu0 %v146
  %177 = vmatpush1.msra.mxu0 %v145
  %178 = vmatprep.subr.mxu0 %v151
  %179 = vmatpush1.msra.mxu0 %v150
  %180 = vmatprep.subr.mxu0 %v156
  %181 = vmatpush1.msra.mxu0 %v155
  %182 = vmatprep.subr.mxu0 %v161
  %183 = vmatpush1.msra.mxu0 %v160
  %184 = vmatprep.subr.mxu0 %v166
  %185 = vmatpush1.msra.mxu0 %v165
  %186 = vmatprep.subr.mxu0 0.0
  %187 = vmatpush1.msra.mxu0 0.0
  %188 = vmatprep.subr.mxu0 0.0
  %189 = vmatpush1.msra.mxu0 0.0
  %190 = vmatprep.subr.mxu0 0.0
  %191 = vmatpush1.msra.mxu0 0.0
  %192 = vmatprep.subr.mxu0 0.0
  %193 = vmatpush1.msra.mxu0 0.0
  %194 = vmatprep.subr.mxu0 0.0
  %195 = vmatpush1.msra.mxu0 0.0
  %196 = vmatprep.subr.mxu0 0.0
  %197 = vmatpush1.msra.mxu0 0.0
  %198 = vmatprep.subr.mxu0 0.0
  %199 = vmatpush1.msra.mxu0 0.0
  %200 = vmatprep.subr.mxu0 0.0
  %201 = vmatpush1.msra.mxu0 0.0
  %202 = vmatprep.subr.mxu0 0.0
  %203 = vmatpush1.msra.mxu0 0.0
  %204 = vmatprep.subr.mxu0 0.0
  %205 = vmatpush1.msra.mxu0 0.0
  %206 = vmatprep.subr.mxu0 0.0
  %207 = vmatpush1.msra.mxu0 0.0
  %208 = vmatprep.subr.mxu0 0.0
  %209 = vmatpush1.msra.mxu0 0.0
  %210 = vmatprep.subr.mxu0 0.0
  %211 = vmatpush1.msra.mxu0 0.0
  %212 = vmatprep.subr.mxu0 0.0
  %213 = vmatpush1.msra.mxu0 0.0
  %214 = vmatprep.subr.mxu0 0.0
  %215 = vmatpush1.msra.mxu0 0.0
  %216 = vmatprep.subr.mxu0 0.0
  %217 = vmatpush1.msra.mxu0 0.0
  %218 = vmatprep.subr.mxu0 0.0
  %219 = vmatpush1.msra.mxu0 0.0
  %220 = vmatprep.subr.mxu0 0.0
  %221 = vmatpush1.msra.mxu0 0.0
  %222 = vmatprep.subr.mxu0 0.0
  %223 = vmatpush1.msra.mxu0 0.0
  %224 = vmatprep.subr.mxu0 0.0
  %225 = vmatpush1.msra.mxu0 0.0
  %226 = vmatprep.subr.mxu0 0.0
  %227 = vmatpush1.msra.mxu0 0.0
  %228 = vmatprep.subr.mxu0 0.0
  %229 = vmatpush1.msra.mxu0 0.0
  %230 = vmatprep.subr.mxu0 0.0
  %231 = vmatpush1.msra.mxu0 0.0
  %232 = vmatprep.subr.mxu0 0.0
  %233 = vmatpush1.msra.mxu0 0.0
  %234 = vmatprep.subr.mxu0 0.0
  %235 = vmatpush1.msra.mxu0 0.0
  %236 = vmatprep.subr.mxu0 0.0
  %237 = vmatpush1.msra.mxu0 0.0
  %238 = vmatprep.mubr.f32.mxu0 0.0
  %239 = vmatmul.mubr.f32.gmra.mrb[0].mxu0 %v172
  %v240 = vpop.f32.mrb[0].mxu0
  %v241 = vadd.f32 0.0, %v240
  %v242 = vpop.f32.mrb[0].mxu0
  %v243 = vadd.f32 0.0, %v242
  %244 = vdwg.mxu0
  %245 = vmatprep.subr.mxu0 %v143
  %246 = vmatpush1.msra.mxu0 %v142
  %247 = vmatprep.subr.mxu0 %v148
  %248 = vmatpush1.msra.mxu0 %v147
  %249 = vmatprep.subr.mxu0 %v153
  %250 = vmatpush1.msra.mxu0 %v152
  %251 = vmatprep.subr.mxu0 %v158
  %252 = vmatpush1.msra.mxu0 %v157
  %253 = vmatprep.subr.mxu0 %v163
  %254 = vmatpush1.msra.mxu0 %v162
  %255 = vmatprep.subr.mxu0 %v168
  %256 = vmatpush1.msra.mxu0 %v167
  %257 = vmatprep.subr.mxu0 0.0
  %258 = vmatpush1.msra.mxu0 0.0
  %259 = vmatprep.subr.mxu0 0.0
  %260 = vmatpush1.msra.mxu0 0.0
  %261 = vmatprep.subr.mxu0 0.0
  %262 = vmatpush1.msra.mxu0 0.0
  %263 = vmatprep.subr.mxu0 0.0
  %264 = vmatpush1.msra.mxu0 0.0
  %265 = vmatprep.subr.mxu0 0.0
  %266 = vmatpush1.msra.mxu0 0.0
  %267 = vmatprep.subr.mxu0 0.0
  %268 = vmatpush1.msra.mxu0 0.0
  %269 = vmatprep.subr.mxu0 0.0
  %270 = vmatpush1.msra.mxu0 0.0
  %271 = vmatprep.subr.mxu0 0.0
  %272 = vmatpush1.msra.mxu0 0.0
  %273 = vmatprep.subr.mxu0 0.0
  %274 = vmatpush1.msra.mxu0 0.0
  %275 = vmatprep.subr.mxu0 0.0
  %276 = vmatpush1.msra.mxu0 0.0
  %277 = vmatprep.subr.mxu0 0.0
  %278 = vmatpush1.msra.mxu0 0.0
  %279 = vmatprep.subr.mxu0 0.0
  %280 = vmatpush1.msra.mxu0 0.0
  %281 = vmatprep.subr.mxu0 0.0
  %282 = vmatpush1.msra.mxu0 0.0
  %283 = vmatprep.subr.mxu0 0.0
  %284 = vmatpush1.msra.mxu0 0.0
  %285 = vmatprep.subr.mxu0 0.0
  %286 = vmatpush1.msra.mxu0 0.0
  %287 = vmatprep.subr.mxu0 0.0
  %288 = vmatpush1.msra.mxu0 0.0
  %289 = vmatprep.subr.mxu0 0.0
  %290 = vmatpush1.msra.mxu0 0.0
  %291 = vmatprep.subr.mxu0 0.0
  %292 = vmatpush1.msra.mxu0 0.0
  %293 = vmatprep.subr.mxu0 0.0
  %294 = vmatpush1.msra.mxu0 0.0
  %295 = vmatprep.subr.mxu0 0.0
  %296 = vmatpush1.msra.mxu0 0.0
  %297 = vmatprep.subr.mxu0 0.0
  %298 = vmatpush1.msra.mxu0 0.0
  %299 = vmatprep.subr.mxu0 0.0
  %300 = vmatpush1.msra.mxu0 0.0
  %301 = vmatprep.subr.mxu0 0.0
  %302 = vmatpush1.msra.mxu0 0.0
  %303 = vmatprep.subr.mxu0 0.0
  %304 = vmatpush1.msra.mxu0 0.0
  %305 = vmatprep.subr.mxu0 0.0
  %306 = vmatpush1.msra.mxu0 0.0
  %307 = vmatprep.subr.mxu0 0.0
  %308 = vmatpush1.msra.mxu0 0.0
  %309 = vmatprep.mubr.f32.mxu0 0.0
  %310 = vmatmul.mubr.f32.gmra.mrb[0].mxu0 %v172
  %v311 = vpop.f32.mrb[0].mxu0
  %v312 = vadd.f32 0.0, %v311
  %v313 = vpop.f32.mrb[0].mxu0
  %v314 = vadd.f32 0.0, %v313
  %315 = vdwg.mxu0
  %316 = vmatprep.subr.mxu0 0.0
  %317 = vmatpush1.msra.mxu0 %v144
  %318 = vmatprep.subr.mxu0 0.0
  %319 = vmatpush1.msra.mxu0 %v149
  %320 = vmatprep.subr.mxu0 0.0
  %321 = vmatpush1.msra.mxu0 %v154
  %322 = vmatprep.subr.mxu0 0.0
  %323 = vmatpush1.msra.mxu0 %v159
  %324 = vmatprep.subr.mxu0 0.0
  %325 = vmatpush1.msra.mxu0 %v164
  %326 = vmatprep.subr.mxu0 0.0
  %327 = vmatpush1.msra.mxu0 %v169
  %328 = vmatprep.subr.mxu0 0.0
  %329 = vmatpush1.msra.mxu0 0.0
  %330 = vmatprep.subr.mxu0 0.0
  %331 = vmatpush1.msra.mxu0 0.0
  %332 = vmatprep.subr.mxu0 0.0
  %333 = vmatpush1.msra.mxu0 0.0
  %334 = vmatprep.subr.mxu0 0.0
  %335 = vmatpush1.msra.mxu0 0.0
  %336 = vmatprep.subr.mxu0 0.0
  %337 = vmatpush1.msra.mxu0 0.0
  %338 = vmatprep.subr.mxu0 0.0
  %339 = vmatpush1.msra.mxu0 0.0
  %340 = vmatprep.subr.mxu0 0.0
  %341 = vmatpush1.msra.mxu0 0.0
  %342 = vmatprep.subr.mxu0 0.0
  %343 = vmatpush1.msra.mxu0 0.0
  %344 = vmatprep.subr.mxu0 0.0
  %345 = vmatpush1.msra.mxu0 0.0
  %346 = vmatprep.subr.mxu0 0.0
  %347 = vmatpush1.msra.mxu0 0.0
  %348 = vmatprep.subr.mxu0 0.0
  %349 = vmatpush1.msra.mxu0 0.0
  %350 = vmatprep.subr.mxu0 0.0
  %351 = vmatpush1.msra.mxu0 0.0
  %352 = vmatprep.subr.mxu0 0.0
  %353 = vmatpush1.msra.mxu0 0.0
  %354 = vmatprep.subr.mxu0 0.0
  %355 = vmatpush1.msra.mxu0 0.0
  %356 = vmatprep.subr.mxu0 0.0
  %357 = vmatpush1.msra.mxu0 0.0
  %358 = vmatprep.subr.mxu0 0.0
  %359 = vmatpush1.msra.mxu0 0.0
  %360 = vmatprep.subr.mxu0 0.0
  %361 = vmatpush1.msra.mxu0 0.0
  %362 = vmatprep.subr.mxu0 0.0
  %363 = vmatpush1.msra.mxu0 0.0
  %364 = vmatprep.subr.mxu0 0.0
  %365 = vmatpush1.msra.mxu0 0.0
  %366 = vmatprep.subr.mxu0 0.0
  %367 = vmatpush1.msra.mxu0 0.0
  %368 = vmatprep.subr.mxu0 0.0
  %369 = vmatpush1.msra.mxu0 0.0
  %370 = vmatprep.subr.mxu0 0.0
  %371 = vmatpush1.msra.mxu0 0.0
  %372 = vmatprep.subr.mxu0 0.0
  %373 = vmatpush1.msra.mxu0 0.0
  %374 = vmatprep.subr.mxu0 0.0
  %375 = vmatpush1.msra.mxu0 0.0
  %376 = vmatprep.subr.mxu0 0.0
  %377 = vmatpush1.msra.mxu0 0.0
  %378 = vmatprep.subr.mxu0 0.0
  %379 = vmatpush1.msra.mxu0 0.0
  %380 = vmatprep.mubr.f32.mxu0 0.0
  %381 = vmatmul.mubr.f32.gmra.mrb[0].mxu0 %v172
  %v382 = vpop.f32.mrb[0].mxu0
  %v383 = vadd.f32 0.0, %v382
  %v384 = vpop.f32.mrb[0].mxu0
  %385 = vdwg.mxu0
  %v387 = vsel %vm40, %v135, 0
  %v390 = vsel %vm40, %v136, 0
  %v393 = vsel %vm40, %v137, 0
  %v396 = vsel %vm40, %v138, 0
  %v399 = vsel %vm40, %v139, 0
  %401 = vmatprep.subr.mxu0 %v126
  %402 = vmatpush1.msra.mxu0 %v125
  %403 = vmatprep.subr.mxu0 %v131
  %404 = vmatpush1.msra.mxu0 %v130
  %405 = vmatprep.subr.mxu0 %v390
  %406 = vmatpush1.msra.mxu0 %v387
  %407 = vmatprep.subr.mxu0 0.0
  %408 = vmatpush1.msra.mxu0 0.0
  %409 = vmatprep.subr.mxu0 0.0
  %410 = vmatpush1.msra.mxu0 0.0
  %411 = vmatprep.subr.mxu0 0.0
  %412 = vmatpush1.msra.mxu0 0.0
  %413 = vmatprep.subr.mxu0 0.0
  %414 = vmatpush1.msra.mxu0 0.0
  %415 = vmatprep.subr.mxu0 0.0
  %416 = vmatpush1.msra.mxu0 0.0
  %417 = vmatprep.subr.mxu0 0.0
  %418 = vmatpush1.msra.mxu0 0.0
  %419 = vmatprep.subr.mxu0 0.0
  %420 = vmatpush1.msra.mxu0 0.0
  %421 = vmatprep.subr.mxu0 0.0
  %422 = vmatpush1.msra.mxu0 0.0
  %423 = vmatprep.subr.mxu0 0.0
  %424 = vmatpush1.msra.mxu0 0.0
  %425 = vmatprep.subr.mxu0 0.0
  %426 = vmatpush1.msra.mxu0 0.0
  %427 = vmatprep.subr.mxu0 0.0
  %428 = vmatpush1.msra.mxu0 0.0
  %429 = vmatprep.subr.mxu0 0.0
  %430 = vmatpush1.msra.mxu0 0.0
  %431 = vmatprep.subr.mxu0 0.0
  %432 = vmatpush1.msra.mxu0 0.0
  %433 = vmatprep.subr.mxu0 0.0
  %434 = vmatpush1.msra.mxu0 0.0
  %435 = vmatprep.subr.mxu0 0.0
  %436 = vmatpush1.msra.mxu0 0.0
  %437 = vmatprep.subr.mxu0 0.0
  %438 = vmatpush1.msra.mxu0 0.0
  %439 = vmatprep.subr.mxu0 0.0
  %440 = vmatpush1.msra.mxu0 0.0
  %441 = vmatprep.subr.mxu0 0.0
  %442 = vmatpush1.msra.mxu0 0.0
  %443 = vmatprep.subr.mxu0 0.0
  %444 = vmatpush1.msra.mxu0 0.0
  %445 = vmatprep.subr.mxu0 0.0
  %446 = vmatpush1.msra.mxu0 0.0
  %447 = vmatprep.subr.mxu0 0.0
  %448 = vmatpush1.msra.mxu0 0.0
  %449 = vmatprep.subr.mxu0 0.0
  %450 = vmatpush1.msra.mxu0 0.0
  %451 = vmatprep.subr.mxu0 0.0
  %452 = vmatpush1.msra.mxu0 0.0
  %453 = vmatprep.subr.mxu0 0.0
  %454 = vmatpush1.msra.mxu0 0.0
  %455 = vmatprep.subr.mxu0 0.0
  %456 = vmatpush1.msra.mxu0 0.0
  %457 = vmatprep.subr.mxu0 0.0
  %458 = vmatpush1.msra.mxu0 0.0
  %459 = vmatprep.subr.mxu0 0.0
  %460 = vmatpush1.msra.mxu0 0.0
  %461 = vmatprep.subr.mxu0 0.0
  %462 = vmatpush1.msra.mxu0 0.0
  %463 = vmatprep.subr.mxu0 0.0
  %464 = vmatpush1.msra.mxu0 0.0
  %465 = vmatprep.mubr.f32.mxu0 0.0
  %466 = vmatmul.mubr.f32.gmra.mrb[0].mxu0 %v38
  %v467 = vpop.f32.mrb[0].mxu0
  %v468 = vadd.f32 %v241, %v467
  %v469 = vpop.f32.mrb[0].mxu0
  %v470 = vadd.f32 %v243, %v469
  %471 = vdwg.mxu0
  %472 = vmatprep.subr.mxu0 %v128
  %473 = vmatpush1.msra.mxu0 %v127
  %474 = vmatprep.subr.mxu0 %v133
  %475 = vmatpush1.msra.mxu0 %v132
  %476 = vmatprep.subr.mxu0 %v396
  %477 = vmatpush1.msra.mxu0 %v393
  %478 = vmatprep.subr.mxu0 0.0
  %479 = vmatpush1.msra.mxu0 0.0
  %480 = vmatprep.subr.mxu0 0.0
  %481 = vmatpush1.msra.mxu0 0.0
  %482 = vmatprep.subr.mxu0 0.0
  %483 = vmatpush1.msra.mxu0 0.0
  %484 = vmatprep.subr.mxu0 0.0
  %485 = vmatpush1.msra.mxu0 0.0
  %486 = vmatprep.subr.mxu0 0.0
  %487 = vmatpush1.msra.mxu0 0.0
  %488 = vmatprep.subr.mxu0 0.0
  %489 = vmatpush1.msra.mxu0 0.0
  %490 = vmatprep.subr.mxu0 0.0
  %491 = vmatpush1.msra.mxu0 0.0
  %492 = vmatprep.subr.mxu0 0.0
  %493 = vmatpush1.msra.mxu0 0.0
  %494 = vmatprep.subr.mxu0 0.0
  %495 = vmatpush1.msra.mxu0 0.0
  %496 = vmatprep.subr.mxu0 0.0
  %497 = vmatpush1.msra.mxu0 0.0
  %498 = vmatprep.subr.mxu0 0.0
  %499 = vmatpush1.msra.mxu0 0.0
  %500 = vmatprep.subr.mxu0 0.0
  %501 = vmatpush1.msra.mxu0 0.0
  %502 = vmatprep.subr.mxu0 0.0
  %503 = vmatpush1.msra.mxu0 0.0
  %504 = vmatprep.subr.mxu0 0.0
  %505 = vmatpush1.msra.mxu0 0.0
  %506 = vmatprep.subr.mxu0 0.0
  %507 = vmatpush1.msra.mxu0 0.0
  %508 = vmatprep.subr.mxu0 0.0
  %509 = vmatpush1.msra.mxu0 0.0
  %510 = vmatprep.subr.mxu0 0.0
  %511 = vmatpush1.msra.mxu0 0.0
  %512 = vmatprep.subr.mxu0 0.0
  %513 = vmatpush1.msra.mxu0 0.0
  %514 = vmatprep.subr.mxu0 0.0
  %515 = vmatpush1.msra.mxu0 0.0
  %516 = vmatprep.subr.mxu0 0.0
  %517 = vmatpush1.msra.mxu0 0.0
  %518 = vmatprep.subr.mxu0 0.0
  %519 = vmatpush1.msra.mxu0 0.0
  %520 = vmatprep.subr.mxu0 0.0
  %521 = vmatpush1.msra.mxu0 0.0
  %522 = vmatprep.subr.mxu0 0.0
  %523 = vmatpush1.msra.mxu0 0.0
  %524 = vmatprep.subr.mxu0 0.0
  %525 = vmatpush1.msra.mxu0 0.0
  %526 = vmatprep.subr.mxu0 0.0
  %527 = vmatpush1.msra.mxu0 0.0
  %528 = vmatprep.subr.mxu0 0.0
  %529 = vmatpush1.msra.mxu0 0.0
  %530 = vmatprep.subr.mxu0 0.0
  %531 = vmatpush1.msra.mxu0 0.0
  %532 = vmatprep.subr.mxu0 0.0
  %533 = vmatpush1.msra.mxu0 0.0
  %534 = vmatprep.subr.mxu0 0.0
  %535 = vmatpush1.msra.mxu0 0.0
  %536 = vmatprep.mubr.f32.mxu0 0.0
  %537 = vmatmul.mubr.f32.gmra.mrb[0].mxu0 %v38
  %v538 = vpop.f32.mrb[0].mxu0
  %v539 = vadd.f32 %v312, %v538
  %v540 = vpop.f32.mrb[0].mxu0
  %v541 = vadd.f32 %v314, %v540
  %542 = vdwg.mxu0
  %543 = vmatprep.subr.mxu0 0.0
  %544 = vmatpush1.msra.mxu0 %v129
  %545 = vmatprep.subr.mxu0 0.0
  %546 = vmatpush1.msra.mxu0 %v134
  %547 = vmatprep.subr.mxu0 0.0
  %548 = vmatpush1.msra.mxu0 %v399
  %549 = vmatprep.subr.mxu0 0.0
  %550 = vmatpush1.msra.mxu0 0.0
  %551 = vmatprep.subr.mxu0 0.0
  %552 = vmatpush1.msra.mxu0 0.0
  %553 = vmatprep.subr.mxu0 0.0
  %554 = vmatpush1.msra.mxu0 0.0
  %555 = vmatprep.subr.mxu0 0.0
  %556 = vmatpush1.msra.mxu0 0.0
  %557 = vmatprep.subr.mxu0 0.0
  %558 = vmatpush1.msra.mxu0 0.0
  %559 = vmatprep.subr.mxu0 0.0
  %560 = vmatpush1.msra.mxu0 0.0
  %561 = vmatprep.subr.mxu0 0.0
  %562 = vmatpush1.msra.mxu0 0.0
  %563 = vmatprep.subr.mxu0 0.0
  %564 = vmatpush1.msra.mxu0 0.0
  %565 = vmatprep.subr.mxu0 0.0
  %566 = vmatpush1.msra.mxu0 0.0
  %567 = vmatprep.subr.mxu0 0.0
  %568 = vmatpush1.msra.mxu0 0.0
  %569 = vmatprep.subr.mxu0 0.0
  %570 = vmatpush1.msra.mxu0 0.0
  %571 = vmatprep.subr.mxu0 0.0
  %572 = vmatpush1.msra.mxu0 0.0
  %573 = vmatprep.subr.mxu0 0.0
  %574 = vmatpush1.msra.mxu0 0.0
  %575 = vmatprep.subr.mxu0 0.0
  %576 = vmatpush1.msra.mxu0 0.0
  %577 = vmatprep.subr.mxu0 0.0
  %578 = vmatpush1.msra.mxu0 0.0
  %579 = vmatprep.subr.mxu0 0.0
  %580 = vmatpush1.msra.mxu0 0.0
  %581 = vmatprep.subr.mxu0 0.0
  %582 = vmatpush1.msra.mxu0 0.0
  %583 = vmatprep.subr.mxu0 0.0
  %584 = vmatpush1.msra.mxu0 0.0
  %585 = vmatprep.subr.mxu0 0.0
  %586 = vmatpush1.msra.mxu0 0.0
  %587 = vmatprep.subr.mxu0 0.0
  %588 = vmatpush1.msra.mxu0 0.0
  %589 = vmatprep.subr.mxu0 0.0
  %590 = vmatpush1.msra.mxu0 0.0
  %591 = vmatprep.subr.mxu0 0.0
  %592 = vmatpush1.msra.mxu0 0.0
  %593 = vmatprep.subr.mxu0 0.0
  %594 = vmatpush1.msra.mxu0 0.0
  %595 = vmatprep.subr.mxu0 0.0
  %596 = vmatpush1.msra.mxu0 0.0
  %597 = vmatprep.subr.mxu0 0.0
  %598 = vmatpush1.msra.mxu0 0.0
  %599 = vmatprep.subr.mxu0 0.0
  %600 = vmatpush1.msra.mxu0 0.0
  %601 = vmatprep.subr.mxu0 0.0
  %602 = vmatpush1.msra.mxu0 0.0
  %603 = vmatprep.subr.mxu0 0.0
  %604 = vmatpush1.msra.mxu0 0.0
  %605 = vmatprep.subr.mxu0 0.0
  %606 = vmatpush1.msra.mxu0 0.0
  %607 = vmatprep.mubr.f32.mxu0 0.0
  %608 = vmatmul.mubr.f32.gmra.mrb[0].mxu0 %v38
  %v609 = vpop.f32.mrb[0].mxu0
  %v610 = vadd.f32 %v383, %v609
  %v611 = vpop.f32.mrb[0].mxu0
  %612 = vdwg.mxu0
  %v613 = vld [vmem:[%s5] sm:$0x1f]
  %v615 = vlaneseq
  %v616 = vshrl.u32 %v615, 7
  %v617 = vsub.s32 0, %v616
  %v618 = vrot.slane %v613, %v617
  %v619 = vlaneseq
  %v620 = vshrl.u32 %v619, 7
  %v621 = vsub.s32 1, %v620
  %v622 = vrot.slane %v613, %v621
  %v623 = vlaneseq
  %v624 = vshrl.u32 %v623, 7
  %v625 = vsub.s32 2, %v624
  %v626 = vrot.slane %v613, %v625
  %v627 = vlaneseq
  %v628 = vshrl.u32 %v627, 7
  %v629 = vsub.s32 3, %v628
  %v630 = vrot.slane %v613, %v629
  %v631 = vlaneseq
  %v632 = vshrl.u32 %v631, 7
  %v633 = vsub.s32 4, %v632
  %v634 = vrot.slane %v613, %v633
  %v640 = vadd.f32 %v468, %v618
  %v641 = vadd.f32 %v470, %v622
  %v642 = vadd.f32 %v539, %v626
  %v643 = vadd.f32 %v541, %v630
  %v644 = vadd.f32 %v610, %v634
  %v645 = vld [vmem:[%s6] sm:$0xff]
  %v646 = vld [vmem:[%s6 + $0x8] sm:$0xff]
  %v647 = vld [vmem:[%s6 + $0x10] sm:$0xff]
  %v648 = vld [vmem:[%s6 + $0x18] sm:$0xff]
  %v649 = vld [vmem:[%s6 + $0x20] sm:$0xff]
  %v650 = vld [vmem:[%s6 + $0x28] sm:$0xff]
  %v651 = vld [vmem:[%s6 + $0x30] sm:$0xff]
  %v652 = vld [vmem:[%s6 + $0x38] sm:$0xff]
  %v653 = vld [vmem:[%s6 + $0x40] sm:$0xff]
  %v654 = vld [vmem:[%s6 + $0x48] sm:$0xff]
  %v655 = vld [vmem:[%s6 + $0x50] sm:$0xff]
  %v656 = vld [vmem:[%s6 + $0x58] sm:$0xff]
  %v657 = vld [vmem:[%s6 + $0x60] sm:$0xff]
  %v658 = vld [vmem:[%s6 + $0x68] sm:$0xff]
  %v659 = vld [vmem:[%s6 + $0x70] sm:$0xff]
  %v660 = vld [vmem:[%s6 + $0x78] sm:$0xff]
  %v661 = vld [vmem:[%s6 + $0x80] sm:$0xff]
  %v662 = vld [vmem:[%s6 + $0x88] sm:$0xff]
  %v663 = vld [vmem:[%s6 + $0x90] sm:$0xff]
  %v664 = vld [vmem:[%s6 + $0x98] sm:$0xff]
  %v665 = vld [vmem:[%s6 + $0xa0] sm:$0xff]
  %v666 = vld [vmem:[%s6 + $0xa8] sm:$0xff]
  %v667 = vld [vmem:[%s6 + $0xb0] sm:$0xff]
  %v668 = vld [vmem:[%s6 + $0xb8] sm:$0xff]
  %v669 = vld [vmem:[%s6 + $0xc0] sm:$0xff]
  %v670 = vld [vmem:[%s6 + $0xc8] sm:$0xff]
  %v671 = vld [vmem:[%s6 + $0xd0] sm:$0xff]
  %v672 = vld [vmem:[%s6 + $0xd8] sm:$0xff]
  %v673 = vld [vmem:[%s6 + $0xe0] sm:$0xff]
  %v674 = vld [vmem:[%s6 + $0xe8] sm:$0xff]
  %v675 = vld [vmem:[%s6 + $0xf0] sm:$0xff]
  %v676 = vld [vmem:[%s6 + $0xf8] sm:$0xff]
  %v677 = vld [vmem:[%s6 + $0x100] sm:$0xff]
  %v678 = vld [vmem:[%s6 + $0x108] sm:$0xff]
  %v679 = vld [vmem:[%s6 + $0x110] sm:$0xff]
  %v680 = vld [vmem:[%s6 + $0x118] sm:$0xff]
  %v681 = vld [vmem:[%s6 + $0x120] sm:$0xff]
  %v682 = vld [vmem:[%s6 + $0x128] sm:$0xff]
  %v683 = vld [vmem:[%s6 + $0x130] sm:$0xff]
  %v684 = vld [vmem:[%s6 + $0x138] sm:$0xff]
  %v685 = vld [vmem:[%s6 + $0x140] sm:$0xff]
  %v686 = vld [vmem:[%s6 + $0x148] sm:$0xff]
  %v687 = vld [vmem:[%s6 + $0x150] sm:$0xff]
  %v688 = vld [vmem:[%s6 + $0x158] sm:$0xff]
  %v689 = vld [vmem:[%s6 + $0x160] sm:$0xff]
  %v690 = vld [vmem:[%s6 + $0x168] sm:$0xff]
  %v691 = vld [vmem:[%s6 + $0x170] sm:$0xff]
  %v692 = vld [vmem:[%s6 + $0x178] sm:$0xff]
  %v693 = vld [vmem:[%s6 + $0x180] sm:$0xff]
  %v694 = vld [vmem:[%s6 + $0x188] sm:$0xff]
  %v695 = vld [vmem:[%s6 + $0x190] sm:$0xff]
  %v696 = vld [vmem:[%s6 + $0x198] sm:$0xff]
  %v697 = vld [vmem:[%s6 + $0x1a0] sm:$0xff]
  %v698 = vld [vmem:[%s6 + $0x1a8] sm:$0xff]
  %v699 = vld [vmem:[%s6 + $0x1b0] sm:$0xff]
  %v700 = vld [vmem:[%s6 + $0x1b8] sm:$0xff]
  %v701 = vld [vmem:[%s6 + $0x1c0] sm:$0xff]
  %v702 = vld [vmem:[%s6 + $0x1c8] sm:$0xff]
  %v703 = vld [vmem:[%s6 + $0x1d0] sm:$0xff]
  %v704 = vld [vmem:[%s6 + $0x1d8] sm:$0xff]
  %v705 = vld [vmem:[%s6 + $0x1e0] sm:$0xff]
  %v706 = vld [vmem:[%s6 + $0x1e8] sm:$0xff]
  %v707 = vld [vmem:[%s6 + $0x1f0] sm:$0xff]
  %v708 = vld [vmem:[%s6 + $0x1f8] sm:$0xff]
  %v709 = vld [vmem:[%s6 + $0x200] sm:$0xff]
  %v710 = vld [vmem:[%s6 + $0x208] sm:$0xff]
  %v711 = vld [vmem:[%s6 + $0x210] sm:$0xff]
  %v712 = vld [vmem:[%s6 + $0x218] sm:$0xff]
  %v713 = vld [vmem:[%s6 + $0x220] sm:$0xff]
  %v714 = vld [vmem:[%s6 + $0x228] sm:$0xff]
  %v715 = vld [vmem:[%s6 + $0x230] sm:$0xff]
  %v716 = vld [vmem:[%s6 + $0x238] sm:$0xff]
  %v717 = vld [vmem:[%s6 + $0x240] sm:$0xff]
  %v718 = vld [vmem:[%s6 + $0x248] sm:$0xff]
  %v719 = vld [vmem:[%s6 + $0x250] sm:$0xff]
  %v720 = vld [vmem:[%s6 + $0x258] sm:$0xff]
  %v721 = vld [vmem:[%s6 + $0x260] sm:$0xff]
  %v722 = vld [vmem:[%s6 + $0x268] sm:$0xff]
  %v723 = vld [vmem:[%s6 + $0x270] sm:$0xff]
  %v724 = vld [vmem:[%s6 + $0x278] sm:$0xff]
  %v725 = vld [vmem:[%s7] sm:$0x1]
  %v727 = vlaneseq
  %v728 = vshrl.u32 %v727, 7
  %v729 = vsub.s32 0, %v728
  %v730 = vrot.slane %v725, %v729
  %732 = vmatprep.subr.mxu0 0.0
  %733 = vmatpush1.msra.mxu0 %v645
  %734 = vmatprep.subr.mxu0 0.0
  %735 = vmatpush1.msra.mxu0 %v646
  %736 = vmatprep.subr.mxu0 0.0
  %737 = vmatpush1.msra.mxu0 %v647
  %738 = vmatprep.subr.mxu0 0.0
  %739 = vmatpush1.msra.mxu0 %v648
  %740 = vmatprep.subr.mxu0 0.0
  %741 = vmatpush1.msra.mxu0 %v649
  %742 = vmatprep.subr.mxu0 0.0
  %743 = vmatpush1.msra.mxu0 %v650
  %744 = vmatprep.subr.mxu0 0.0
  %745 = vmatpush1.msra.mxu0 %v651
  %746 = vmatprep.subr.mxu0 0.0
  %747 = vmatpush1.msra.mxu0 %v652
  %748 = vmatprep.subr.mxu0 0.0
  %749 = vmatpush1.msra.mxu0 %v653
  %750 = vmatprep.subr.mxu0 0.0
  %751 = vmatpush1.msra.mxu0 %v654
  %752 = vmatprep.subr.mxu0 0.0
  %753 = vmatpush1.msra.mxu0 %v655
  %754 = vmatprep.subr.mxu0 0.0
  %755 = vmatpush1.msra.mxu0 %v656
  %756 = vmatprep.subr.mxu0 0.0
  %757 = vmatpush1.msra.mxu0 %v657
  %758 = vmatprep.subr.mxu0 0.0
  %759 = vmatpush1.msra.mxu0 %v658
  %760 = vmatprep.subr.mxu0 0.0
  %761 = vmatpush1.msra.mxu0 %v659
  %762 = vmatprep.subr.mxu0 0.0
  %763 = vmatpush1.msra.mxu0 %v660
  %764 = vmatprep.subr.mxu0 0.0
  %765 = vmatpush1.msra.mxu0 %v661
  %766 = vmatprep.subr.mxu0 0.0
  %767 = vmatpush1.msra.mxu0 %v662
  %768 = vmatprep.subr.mxu0 0.0
  %769 = vmatpush1.msra.mxu0 %v663
  %770 = vmatprep.subr.mxu0 0.0
  %771 = vmatpush1.msra.mxu0 %v664
  %772 = vmatprep.subr.mxu0 0.0
  %773 = vmatpush1.msra.mxu0 %v665
  %774 = vmatprep.subr.mxu0 0.0
  %775 = vmatpush1.msra.mxu0 %v666
  %776 = vmatprep.subr.mxu0 0.0
  %777 = vmatpush1.msra.mxu0 %v667
  %778 = vmatprep.subr.mxu0 0.0
  %779 = vmatpush1.msra.mxu0 %v668
  %780 = vmatprep.subr.mxu0 0.0
  %781 = vmatpush1.msra.mxu0 %v669
  %782 = vmatprep.subr.mxu0 0.0
  %783 = vmatpush1.msra.mxu0 %v670
  %784 = vmatprep.subr.mxu0 0.0
  %785 = vmatpush1.msra.mxu0 %v671
  %786 = vmatprep.subr.mxu0 0.0
  %787 = vmatpush1.msra.mxu0 %v672
  %788 = vmatprep.subr.mxu0 0.0
  %789 = vmatpush1.msra.mxu0 %v673
  %790 = vmatprep.subr.mxu0 0.0
  %791 = vmatpush1.msra.mxu0 %v674
  %792 = vmatprep.subr.mxu0 0.0
  %793 = vmatpush1.msra.mxu0 %v675
  %794 = vmatprep.subr.mxu0 0.0
  %795 = vmatpush1.msra.mxu0 %v676
  %796 = vmatprep.mubr.f32.mxu0 %v641
  %797 = vmatmul.mubr.f32.gmra.mrb[0].mxu0 %v640
  %v798 = vpop.f32.mrb[0].mxu0
  %v799 = vadd.f32 %v730, %v798
  %v800 = vpop.f32.mrb[0].mxu0
  %801 = vdwg.mxu0
  %802 = vmatprep.subr.mxu0 0.0
  %803 = vmatpush1.msra.mxu0 %v677
  %804 = vmatprep.subr.mxu0 0.0
  %805 = vmatpush1.msra.mxu0 %v678
  %806 = vmatprep.subr.mxu0 0.0
  %807 = vmatpush1.msra.mxu0 %v679
  %808 = vmatprep.subr.mxu0 0.0
  %809 = vmatpush1.msra.mxu0 %v680
  %810 = vmatprep.subr.mxu0 0.0
  %811 = vmatpush1.msra.mxu0 %v681
  %812 = vmatprep.subr.mxu0 0.0
  %813 = vmatpush1.msra.mxu0 %v682
  %814 = vmatprep.subr.mxu0 0.0
  %815 = vmatpush1.msra.mxu0 %v683
  %816 = vmatprep.subr.mxu0 0.0
  %817 = vmatpush1.msra.mxu0 %v684
  %818 = vmatprep.subr.mxu0 0.0
  %819 = vmatpush1.msra.mxu0 %v685
  %820 = vmatprep.subr.mxu0 0.0
  %821 = vmatpush1.msra.mxu0 %v686
  %822 = vmatprep.subr.mxu0 0.0
  %823 = vmatpush1.msra.mxu0 %v687
  %824 = vmatprep.subr.mxu0 0.0
  %825 = vmatpush1.msra.mxu0 %v688
  %826 = vmatprep.subr.mxu0 0.0
  %827 = vmatpush1.msra.mxu0 %v689
  %828 = vmatprep.subr.mxu0 0.0
  %829 = vmatpush1.msra.mxu0 %v690
  %830 = vmatprep.subr.mxu0 0.0
  %831 = vmatpush1.msra.mxu0 %v691
  %832 = vmatprep.subr.mxu0 0.0
  %833 = vmatpush1.msra.mxu0 %v692
  %834 = vmatprep.subr.mxu0 0.0
  %835 = vmatpush1.msra.mxu0 %v693
  %836 = vmatprep.subr.mxu0 0.0
  %837 = vmatpush1.msra.mxu0 %v694
  %838 = vmatprep.subr.mxu0 0.0
  %839 = vmatpush1.msra.mxu0 %v695
  %840 = vmatprep.subr.mxu0 0.0
  %841 = vmatpush1.msra.mxu0 %v696
  %842 = vmatprep.subr.mxu0 0.0
  %843 = vmatpush1.msra.mxu0 %v697
  %844 = vmatprep.subr.mxu0 0.0
  %845 = vmatpush1.msra.mxu0 %v698
  %846 = vmatprep.subr.mxu0 0.0
  %847 = vmatpush1.msra.mxu0 %v699
  %848 = vmatprep.subr.mxu0 0.0
  %849 = vmatpush1.msra.mxu0 %v700
  %850 = vmatprep.subr.mxu0 0.0
  %851 = vmatpush1.msra.mxu0 %v701
  %852 = vmatprep.subr.mxu0 0.0
  %853 = vmatpush1.msra.mxu0 %v702
  %854 = vmatprep.subr.mxu0 0.0
  %855 = vmatpush1.msra.mxu0 %v703
  %856 = vmatprep.subr.mxu0 0.0
  %857 = vmatpush1.msra.mxu0 %v704
  %858 = vmatprep.subr.mxu0 0.0
  %859 = vmatpush1.msra.mxu0 %v705
  %860 = vmatprep.subr.mxu0 0.0
  %861 = vmatpush1.msra.mxu0 %v706
  %862 = vmatprep.subr.mxu0 0.0
  %863 = vmatpush1.msra.mxu0 %v707
  %864 = vmatprep.subr.mxu0 0.0
  %865 = vmatpush1.msra.mxu0 %v708
  %866 = vmatprep.mubr.f32.mxu0 %v643
  %867 = vmatmul.mubr.f32.gmra.mrb[0].mxu0 %v642
  %v868 = vpop.f32.mrb[0].mxu0
  %v869 = vadd.f32 %v799, %v868
  %v870 = vpop.f32.mrb[0].mxu0
  %871 = vdwg.mxu0
  %872 = vmatprep.subr.mxu0 0.0
  %873 = vmatpush1.msra.mxu0 %v709
  %874 = vmatprep.subr.mxu0 0.0
  %875 = vmatpush1.msra.mxu0 %v710
  %876 = vmatprep.subr.mxu0 0.0
  %877 = vmatpush1.msra.mxu0 %v711
  %878 = vmatprep.subr.mxu0 0.0
  %879 = vmatpush1.msra.mxu0 %v712
  %880 = vmatprep.subr.mxu0 0.0
  %881 = vmatpush1.msra.mxu0 %v713
  %882 = vmatprep.subr.mxu0 0.0
  %883 = vmatpush1.msra.mxu0 %v714
  %884 = vmatprep.subr.mxu0 0.0
  %885 = vmatpush1.msra.mxu0 %v715
  %886 = vmatprep.subr.mxu0 0.0
  %887 = vmatpush1.msra.mxu0 %v716
  %888 = vmatprep.subr.mxu0 0.0
  %889 = vmatpush1.msra.mxu0 %v717
  %890 = vmatprep.subr.mxu0 0.0
  %891 = vmatpush1.msra.mxu0 %v718
  %892 = vmatprep.subr.mxu0 0.0
  %893 = vmatpush1.msra.mxu0 %v719
  %894 = vmatprep.subr.mxu0 0.0
  %895 = vmatpush1.msra.mxu0 %v720
  %896 = vmatprep.subr.mxu0 0.0
  %897 = vmatpush1.msra.mxu0 %v721
  %898 = vmatprep.subr.mxu0 0.0
  %899 = vmatpush1.msra.mxu0 %v722
  %900 = vmatprep.subr.mxu0 0.0
  %901 = vmatpush1.msra.mxu0 %v723
  %902 = vmatprep.subr.mxu0 0.0
  %903 = vmatpush1.msra.mxu0 %v724
  %904 = vmatprep.subr.mxu0 0.0
  %905 = vmatpush1.msra.mxu0 0.0
  %906 = vmatprep.subr.mxu0 0.0
  %907 = vmatpush1.msra.mxu0 0.0
  %908 = vmatprep.subr.mxu0 0.0
  %909 = vmatpush1.msra.mxu0 0.0
  %910 = vmatprep.subr.mxu0 0.0
  %911 = vmatpush1.msra.mxu0 0.0
  %912 = vmatprep.subr.mxu0 0.0
  %913 = vmatpush1.msra.mxu0 0.0
  %914 = vmatprep.subr.mxu0 0.0
  %915 = vmatpush1.msra.mxu0 0.0
  %916 = vmatprep.subr.mxu0 0.0
  %917 = vmatpush1.msra.mxu0 0.0
  %918 = vmatprep.subr.mxu0 0.0
  %919 = vmatpush1.msra.mxu0 0.0
  %920 = vmatprep.subr.mxu0 0.0
  %921 = vmatpush1.msra.mxu0 0.0
  %922 = vmatprep.subr.mxu0 0.0
  %923 = vmatpush1.msra.mxu0 0.0
  %924 = vmatprep.subr.mxu0 0.0
  %925 = vmatpush1.msra.mxu0 0.0
  %926 = vmatprep.subr.mxu0 0.0
  %927 = vmatpush1.msra.mxu0 0.0
  %928 = vmatprep.subr.mxu0 0.0
  %929 = vmatpush1.msra.mxu0 0.0
  %930 = vmatprep.subr.mxu0 0.0
  %931 = vmatpush1.msra.mxu0 0.0
  %932 = vmatprep.subr.mxu0 0.0
  %933 = vmatpush1.msra.mxu0 0.0
  %934 = vmatprep.subr.mxu0 0.0
  %935 = vmatpush1.msra.mxu0 0.0
  %936 = vmatprep.mubr.f32.mxu0 0.0
  %937 = vmatmul.mubr.f32.gmra.mrb[0].mxu0 %v644
  %v938 = vpop.f32.mrb[0].mxu0
  %v939 = vadd.f32 %v869, %v938
  %v940 = vpop.f32.mrb[0].mxu0
  %941 = vdwg.mxu0
  %v942 = vld [vmem:[%s8] sm:$0xff]
  %v943 = vadd.f32 %v939, %v942
  %vm944 = vcmask 15360
  %945 = vst.msk [vmem:[%s9] sm:$0xff] %vm944, %v943
  // Predicated region
  $region38: #{tpu_custom_call.1} parent=0 // pred_check
    _
  $region39: #{tpu_custom_call.1} parent=0 // pred_check_branch
    %947 = sbr.rel (0) target = $region41
  $region40: #{tpu_custom_call.1} parent=0 // pred_region
    _
  $region41: #{tpu_custom_call.1} parent=0 // pred_fallthru
    _
  // Predicated region
  $region42: #{tpu_custom_call.1} parent=0 // pred_check
    _
  $region43: #{tpu_custom_call.1} parent=0 // pred_check_branch
    %949 = sbr.rel (0) target = $region45
  $region44: #{tpu_custom_call.1} parent=0 // pred_region
    _
  $region45: #{tpu_custom_call.1} parent=0 // pred_fallthru
    _

</llo_original>
